<compile_context>
chip_gen: v6e
topology: v6e:2x2x1
jax: 0.10.0
libtpu: 0.0.40
codegen_flags: <defaults>
</compile_context>

<pallas_src>
import functools

import jax
import jax.numpy as jnp
from jax import lax
from jax.experimental import pallas as pl
from jax.experimental.pallas import tpu as pltpu


# --------------------------------------------------------------------------
# Kernel
# --------------------------------------------------------------------------
def _graphrec_kernel(xu_ref, xv_ref, wm_ref, vb_ref, out_ref, *, D):
    """One batch tile of the GraphRec MLP head (eval mode, BN/w2 folded).

    xu_ref/xv_ref : [TB, D]     f32  user / item embeddings (batch-major)
    wm_ref        : [4D+16, D]  bf16 packed weights:
                      [0 ,  D)   w_ur1' (bn1 folded)
                      [D , 2D)   w_vr1' (bn2 folded)
                      [2D, 3D)   W3u = w_uv1'[:, :D] @ w_ur2
                      [3D, 4D)   W3v = w_uv1'[:, D:] @ w_vr2
                      [4D, 4D+16) w_uv2' (bn4 folded)
    vb_ref        : [3D+33, 1]  f32 packed biases / final projection:
                      [0,D) b_ur1' | [D,2D) b_vr1' | [2D,3D) b3''
                      [3D,3D+16) b4' | [3D+16,3D+32) w_uv3 | [3D+32] b_uv3
    out_ref       : [1, TB]     f32 scores (lane-dense)
    """
    f32, bf16 = jnp.float32, jnp.bfloat16

    # MXU operands in bf16 (f32 accumulation); bias/ReLU/reduce stay f32.
    xu = xu_ref[...].astype(bf16)              # [TB, D]
    xv = xv_ref[...].astype(bf16)

    w_ur1 = wm_ref[0:D, :]
    w_vr1 = wm_ref[D:2 * D, :]
    w3u = wm_ref[2 * D:3 * D, :]
    w3v = wm_ref[3 * D:4 * D, :]
    w4 = wm_ref[4 * D:4 * D + 16, :]

    b_ur1 = vb_ref[0:D, :]
    b_vr1 = vb_ref[D:2 * D, :]
    b3 = vb_ref[2 * D:3 * D, :]
    b4 = vb_ref[3 * D:3 * D + 16, :]
    w5 = vb_ref[3 * D + 16:3 * D + 32, :]
    b5 = vb_ref[3 * D + 32:3 * D + 33, :]

    # Contract over D (last axis of both operands) -> feature-major [D, TB];
    # the MXU consumes the transposed batch-major operand natively.
    dims = (((1,), (1,)), ((), ()))
    hu = lax.dot_general(w_ur1, xu, dims, preferred_element_type=f32) + b_ur1
    hv = lax.dot_general(w_vr1, xv, dims, preferred_element_type=f32) + b_vr1
    hu = jnp.maximum(hu, 0.0)                  # bn1 folded + ReLU (dropout = id)
    hv = jnp.maximum(hv, 0.0)                  # bn2 folded + ReLU

    # w_ur2/w_vr2 + concat + w_uv1 + bn3 all folded into W3u/W3v/b3''.
    h = (jnp.dot(w3u, hu.astype(bf16), preferred_element_type=f32)
         + jnp.dot(w3v, hv.astype(bf16), preferred_element_type=f32) + b3)
    h = jnp.maximum(h, 0.0)                    # bn3 folded + ReLU

    h = jnp.dot(w4, h.astype(bf16), preferred_element_type=f32) + b4
    h = jnp.maximum(h, 0.0)                    # bn4 folded + ReLU

    # Final 16 -> 1 projection: VPU multiply + sublane reduce (no N=1 matmul).
    out_ref[...] = jnp.sum(h * w5, axis=0, keepdims=True) + b5


# --------------------------------------------------------------------------
# Wrapper
# --------------------------------------------------------------------------
def _round_up(x, m):
    return ((x + m - 1) // m) * m


def graphrec_forward(embeds_u, embeds_v, fparams, *, block_b=4096):
    """embeds_u, embeds_v: [B, D] float32 -> scores: [B] float32."""
    B, D = embeds_u.shape
    assert fparams["D"] == D
    wm, vb = fparams["wm"], fparams["vb"]

    # Batch tile: lane-multiple, <= block_b, and (when B allows) at least two
    # balanced tiles so the "parallel" grid axis shards across v7x's 2 TCs.
    TB = max(128, min(_round_up(block_b, 128), _round_up(-(-B // 2), 128)))
    n_tiles = -(-B // TB)
    Bp = n_tiles * TB

    kernel = functools.partial(_graphrec_kernel, D=D)
    out = pl.pallas_call(
        kernel,
        out_shape=jax.ShapeDtypeStruct((1, Bp), jnp.float32),
        grid=(n_tiles,),
        in_specs=[
            # Batch-major embeddings tiled over the batch: no host-side
            # concat / transpose / pad.  Partial last tile handled by Pallas
            # (garbage lanes are sliced off below).
            pl.BlockSpec((TB, D), lambda i: (i, 0)),
            pl.BlockSpec((TB, D), lambda i: (i, 0)),
            # Packed weight / bias slabs: resident across all batch tiles.
            pl.BlockSpec(wm.shape, lambda i: (0, 0)),
            pl.BlockSpec(vb.shape, lambda i: (0, 0)),
        ],
        out_specs=pl.BlockSpec((1, TB), lambda i: (0, i)),
        compiler_params=pltpu.CompilerParams(
            dimension_semantics=("parallel",)),
        # NOTE: if block_b is pushed past ~8192 on v5e, set vmem_limit_bytes
        # explicitly (16 MiB default scoped VMEM there).
    )(embeds_u, embeds_v, wm, vb)

    return out[0, :B]                           # scores.squeeze()


# --------------------------------------------------------------------------
# Parameters (PyTorch layout) + BN / linear folding + packing
# --------------------------------------------------------------------------
def _linear_params(key, out_f, in_f):
    # nn.Linear default init: U(-1/sqrt(in_f), 1/sqrt(in_f)); weight is [out, in].
    kw, kb = jax.random.split(key)
    bound = 1.0 / (in_f ** 0.5)
    w = jax.random.uniform(kw, (out_f, in_f), jnp.float32, -bound, bound)
    b = jax.random.uniform(kb, (out_f,), jnp.float32, -bound, bound)
    return w, b


def make_graphrec_params(key, embed_dim):
    D = embed_dim
    keys = jax.random.split(key, 11)
    raw = {}
    raw["w_ur1"], raw["b_ur1"] = _linear_params(keys[0], D, D)
    raw["w_ur2"], raw["b_ur2"] = _linear_params(keys[1], D, D)
    raw["w_vr1"], raw["b_vr1"] = _linear_params(keys[2], D, D)
    raw["w_vr2"], raw["b_vr2"] = _linear_params(keys[3], D, D)
    raw["w_uv1"], raw["b_uv1"] = _linear_params(keys[4], D, 2 * D)
    raw["w_uv2"], raw["b_uv2"] = _linear_params(keys[5], 16, D)
    raw["w_uv3"], raw["b_uv3"] = _linear_params(keys[6], 1, 16)

    def bn(k, f):
        kg, kb, km, kv = jax.random.split(k, 4)
        gamma = 1.0 + 0.1 * jax.random.normal(kg, (f,), jnp.float32)
        beta = 0.1 * jax.random.normal(kb, (f,), jnp.float32)
        rmean = 0.05 * jax.random.normal(km, (f,), jnp.float32)
        rvar = 1.0 + 0.1 * jax.random.uniform(kv, (f,), jnp.float32)
        return (gamma, beta, rmean, rvar)

    raw["bn1"] = bn(keys[7], D)
    raw["bn2"] = bn(keys[8], D)
    raw["bn3"] = bn(keys[9], D)
    raw["bn4"] = bn(keys[10], 16)
    return raw


def _fold_bn(gamma, beta, mean, var, eps=1e-5):
    s = gamma / jnp.sqrt(var + eps)
    t = beta - mean * s
    return s, t


def fold_graphrec_params(raw, *, mxu_dtype=jnp.bfloat16):
    """Fold eval-mode BatchNorms and the w_ur2/w_vr2 linears into the
    surrounding layers (all in f32 on the host), then pack everything into
    one weight slab (MXU dtype) and one bias/vector slab (f32)."""
    s1, t1 = _fold_bn(*raw["bn1"])
    s2, t2 = _fold_bn(*raw["bn2"])
    s3, t3 = _fold_bn(*raw["bn3"])
    s4, t4 = _fold_bn(*raw["bn4"])

    # y = s*(W x + b) + t  =>  W' = s[:,None]*W,  b' = s*b + t
    w_ur1 = raw["w_ur1"] * s1[:, None]; b_ur1 = raw["b_ur1"] * s1 + t1
    w_vr1 = raw["w_vr1"] * s2[:, None]; b_vr1 = raw["b_vr1"] * s2 + t2
    w_uv1 = raw["w_uv1"] * s3[:, None]; b_uv1 = raw["b_uv1"] * s3 + t3   # [D, 2D]
    w_uv2 = raw["w_uv2"] * s4[:, None]; b_uv2 = raw["b_uv2"] * s4 + t4   # [16, D]

    D = w_ur1.shape[0]
    # No nonlinearity between w_ur2/w_vr2 and w_uv1 -> exact fold (also
    # absorbs the user/item concat).
    w3u = w_uv1[:, :D] @ raw["w_ur2"]
    w3v = w_uv1[:, D:] @ raw["w_vr2"]
    b3 = w_uv1[:, :D] @ raw["b_ur2"] + w_uv1[:, D:] @ raw["b_vr2"] + b_uv1

    wm = jnp.concatenate([w_ur1, w_vr1, w3u, w3v, w_uv2], axis=0)        # [4D+16, D]
    vb = jnp.concatenate([b_ur1, b_vr1, b3, b_uv2,
                          raw["w_uv3"][0], raw["b_uv3"]])[:, None]       # [3D+33, 1]
    return dict(wm=wm.astype(mxu_dtype), vb=vb.astype(jnp.float32), D=D)


# --------------------------------------------------------------------------
# Plain-JAX reference (directly mirrors the PyTorch eval-mode forward)
# --------------------------------------------------------------------------
def _reference_forward(embeds_u, embeds_v, raw, eps=1e-5):
    def lin(x, w, b):                   # w: [out, in]
        return x @ w.T + b

    def bn(x, p):
        g, be, m, v = p
        return (x - m) / jnp.sqrt(v + eps) * g + be

    x_u = jax.nn.relu(bn(lin(embeds_u, raw["w_ur1"], raw["b_ur1"]), raw["bn1"]))
    x_u = lin(x_u, raw["w_ur2"], raw["b_ur2"])
    x_v = jax.nn.relu(bn(lin(embeds_v, raw["w_vr1"], raw["b_vr1"]), raw["bn2"]))
    x_v = lin(x_v, raw["w_vr2"], raw["b_vr2"])
    x_uv = jnp.concatenate([x_u, x_v], axis=1)
    x = jax.nn.relu(bn(lin(x_uv, raw["w_uv1"], raw["b_uv1"]), raw["bn3"]))
    x = jax.nn.relu(bn(lin(x, raw["w_uv2"], raw["b_uv2"]), raw["bn4"]))
    return lin(x, raw["w_uv3"], raw["b_uv3"])[:, 0]


# --------------------------------------------------------------------------
if __name__ == "__main__":
    B = 8            # batch of (user, item) pairs
    D = 32           # embed_dim
    NUM_USERS = 20
    NUM_ITEMS = 24

    key = jax.random.PRNGKey(0)
    k_params, k_eu, k_ev, k_nu, k_nv = jax.random.split(key, 5)

    raw_params = make_graphrec_params(k_params, D)
    fparams = fold_graphrec_params(raw_params)

    # Stand-ins for enc_u / enc_v_history outputs: embedding tables + id lookup.
    user_table = 0.5 * jax.random.normal(k_eu, (NUM_USERS, D), jnp.float32)
    item_table = 0.5 * jax.random.normal(k_ev, (NUM_ITEMS, D), jnp.float32)
    nodes_u = jax.random.randint(k_nu, (B,), 0, NUM_USERS)
    nodes_v = jax.random.randint(k_nv, (B,), 0, NUM_ITEMS)
    embeds_u = user_table[nodes_u]     # [B, D]
    embeds_v = item_table[nodes_v]     # [B, D]

    scores = jax.block_until_ready(graphrec_forward(embeds_u, embeds_v, fparams))
    ref = _reference_forward(embeds_u, embeds_v, raw_params)

    assert scores.shape == (B,)
    # bf16 MXU operands with f32 accumulation -> loosened tolerance vs f32 ref.
    assert jnp.allclose(scores, ref, atol=5e-2, rtol=5e-2), (
        "max abs err = %g" % float(jnp.max(jnp.abs(scores - ref))))
    print("KERNEL_OK")
</pallas_src>

<mosaic_0001>
module attributes {stable_mosaic.version = 11 : i64} {
  func.func @_graphrec_kernel(%arg0: i32, %arg1: memref<128x32xf32, #tpu.memory_space<vmem>>, %arg2: memref<128x32xf32, #tpu.memory_space<vmem>>, %arg3: memref<144x32xbf16, #tpu.memory_space<vmem>>, %arg4: memref<129x1xf32, #tpu.memory_space<vmem>>, %arg5: memref<1x128xf32, #tpu.memory_space<vmem>>) attributes {dimension_semantics = [#tpu.dimension_semantics<parallel>], iteration_bounds = array<i64: 1>, scalar_prefetch = 0 : i64, scratch_operands = 0 : i64, tpu.core_type = #tpu.core_type<tc>, window_params = [{transform_indices = @transform_0, window_bounds = array<i64: 128, 32>}, {transform_indices = @transform_1, window_bounds = array<i64: 128, 32>}, {pipeline_mode = #tpu.pipeline_mode<synchronous>, transform_indices = @transform_2, window_bounds = array<i64: 144, 32>}, {pipeline_mode = #tpu.pipeline_mode<synchronous>, transform_indices = @transform_3, window_bounds = array<i64: 129, 1>}, {transform_indices = @transform_4, window_bounds = array<i64: 1, 128>}]} {
    %c0 = arith.constant 0 : index
    %c0_0 = arith.constant 0 : index
    %0 = vector.load %arg1[%c0, %c0_0] : memref<128x32xf32, #tpu.memory_space<vmem>>, vector<128x32xf32>
    %1 = arith.truncf %0 : vector<128x32xf32> to vector<128x32xbf16>
    %c0_1 = arith.constant 0 : index
    %c0_2 = arith.constant 0 : index
    %2 = vector.load %arg2[%c0_1, %c0_2] : memref<128x32xf32, #tpu.memory_space<vmem>>, vector<128x32xf32>
    %3 = arith.truncf %2 : vector<128x32xf32> to vector<128x32xbf16>
    %c0_3 = arith.constant 0 : index
    %c0_4 = arith.constant 0 : index
    %4 = vector.load %arg3[%c0_3, %c0_4] : memref<144x32xbf16, #tpu.memory_space<vmem>>, vector<32x32xbf16>
    %c32 = arith.constant 32 : index
    %c0_5 = arith.constant 0 : index
    %5 = vector.load %arg3[%c32, %c0_5] : memref<144x32xbf16, #tpu.memory_space<vmem>>, vector<32x32xbf16>
    %c64 = arith.constant 64 : index
    %c0_6 = arith.constant 0 : index
    %6 = vector.load %arg3[%c64, %c0_6] : memref<144x32xbf16, #tpu.memory_space<vmem>>, vector<32x32xbf16>
    %c96 = arith.constant 96 : index
    %c0_7 = arith.constant 0 : index
    %7 = vector.load %arg3[%c96, %c0_7] : memref<144x32xbf16, #tpu.memory_space<vmem>>, vector<32x32xbf16>
    %c128 = arith.constant 128 : index
    %c0_8 = arith.constant 0 : index
    %8 = vector.load %arg3[%c128, %c0_8] : memref<144x32xbf16, #tpu.memory_space<vmem>>, vector<16x32xbf16>
    %c0_9 = arith.constant 0 : index
    %c0_10 = arith.constant 0 : index
    %9 = vector.load %arg4[%c0_9, %c0_10] : memref<129x1xf32, #tpu.memory_space<vmem>>, vector<32x1xf32>
    %c32_11 = arith.constant 32 : index
    %c0_12 = arith.constant 0 : index
    %10 = vector.load %arg4[%c32_11, %c0_12] : memref<129x1xf32, #tpu.memory_space<vmem>>, vector<32x1xf32>
    %c64_13 = arith.constant 64 : index
    %c0_14 = arith.constant 0 : index
    %11 = vector.load %arg4[%c64_13, %c0_14] : memref<129x1xf32, #tpu.memory_space<vmem>>, vector<32x1xf32>
    %c96_15 = arith.constant 96 : index
    %c0_16 = arith.constant 0 : index
    %12 = vector.load %arg4[%c96_15, %c0_16] : memref<129x1xf32, #tpu.memory_space<vmem>>, vector<16x1xf32>
    %c112 = arith.constant 112 : index
    %c0_17 = arith.constant 0 : index
    %13 = vector.load %arg4[%c112, %c0_17] : memref<129x1xf32, #tpu.memory_space<vmem>>, vector<16x1xf32>
    %c128_18 = arith.constant 128 : index
    %c0_19 = arith.constant 0 : index
    %14 = vector.load %arg4[%c128_18, %c0_19] : memref<129x1xf32, #tpu.memory_space<vmem>>, vector<1x1xf32>
    %cst = arith.constant dense<0.000000e+00> : vector<32x128xf32>
    %15 = tpu.matmul %4, %1, %cst {dimension_numbers = #tpu.dot_dimension_numbers<[1], [1], [0], [0], [0, 0, 1, 0], [], []>} : vector<32x32xbf16>, vector<128x32xbf16>, vector<32x128xf32> -> vector<32x128xf32>
    %16 = vector.broadcast %9 : vector<32x1xf32> to vector<32x128xf32>
    %17 = arith.addf %15, %16 : vector<32x128xf32>
    %cst_20 = arith.constant dense<0.000000e+00> : vector<32x128xf32>
    %18 = tpu.matmul %5, %3, %cst_20 {dimension_numbers = #tpu.dot_dimension_numbers<[1], [1], [0], [0], [0, 0, 1, 0], [], []>} : vector<32x32xbf16>, vector<128x32xbf16>, vector<32x128xf32> -> vector<32x128xf32>
    %19 = vector.broadcast %10 : vector<32x1xf32> to vector<32x128xf32>
    %20 = arith.addf %18, %19 : vector<32x128xf32>
    %cst_21 = arith.constant 0.000000e+00 : f32
    %21 = vector.broadcast %cst_21 : f32 to vector<32x128xf32>
    %22 = arith.maximumf %17, %21 : vector<32x128xf32>
    %cst_22 = arith.constant 0.000000e+00 : f32
    %23 = vector.broadcast %cst_22 : f32 to vector<32x128xf32>
    %24 = arith.maximumf %20, %23 : vector<32x128xf32>
    %25 = arith.truncf %22 : vector<32x128xf32> to vector<32x128xbf16>
    %cst_23 = arith.constant dense<0.000000e+00> : vector<32x128xf32>
    %26 = tpu.matmul %6, %25, %cst_23 {dimension_numbers = #tpu.dot_dimension_numbers<[1], [0], [0], [1], [0, 0, 1, 1], [], []>} : vector<32x32xbf16>, vector<32x128xbf16>, vector<32x128xf32> -> vector<32x128xf32>
    %27 = arith.truncf %24 : vector<32x128xf32> to vector<32x128xbf16>
    %cst_24 = arith.constant dense<0.000000e+00> : vector<32x128xf32>
    %28 = tpu.matmul %7, %27, %cst_24 {dimension_numbers = #tpu.dot_dimension_numbers<[1], [0], [0], [1], [0, 0, 1, 1], [], []>} : vector<32x32xbf16>, vector<32x128xbf16>, vector<32x128xf32> -> vector<32x128xf32>
    %29 = arith.addf %26, %28 : vector<32x128xf32>
    %30 = vector.broadcast %11 : vector<32x1xf32> to vector<32x128xf32>
    %31 = arith.addf %29, %30 : vector<32x128xf32>
    %cst_25 = arith.constant 0.000000e+00 : f32
    %32 = vector.broadcast %cst_25 : f32 to vector<32x128xf32>
    %33 = arith.maximumf %31, %32 : vector<32x128xf32>
    %34 = arith.truncf %33 : vector<32x128xf32> to vector<32x128xbf16>
    %cst_26 = arith.constant dense<0.000000e+00> : vector<16x128xf32>
    %35 = tpu.matmul %8, %34, %cst_26 {dimension_numbers = #tpu.dot_dimension_numbers<[1], [0], [0], [1], [0, 0, 1, 1], [], []>} : vector<16x32xbf16>, vector<32x128xbf16>, vector<16x128xf32> -> vector<16x128xf32>
    %36 = vector.broadcast %12 : vector<16x1xf32> to vector<16x128xf32>
    %37 = arith.addf %35, %36 : vector<16x128xf32>
    %cst_27 = arith.constant 0.000000e+00 : f32
    %38 = vector.broadcast %cst_27 : f32 to vector<16x128xf32>
    %39 = arith.maximumf %37, %38 : vector<16x128xf32>
    %40 = vector.broadcast %13 : vector<16x1xf32> to vector<16x128xf32>
    %41 = arith.mulf %39, %40 : vector<16x128xf32>
    %cst_28 = arith.constant dense<0.000000e+00> : vector<128xf32>
    %42 = vector.multi_reduction <add>, %41, %cst_28 [0] : vector<16x128xf32> to vector<128xf32>
    %43 = vector.shape_cast %42 : vector<128xf32> to vector<1x128xf32>
    %44 = vector.broadcast %14 : vector<1x1xf32> to vector<1x128xf32>
    %45 = arith.addf %43, %44 : vector<1x128xf32>
    %c0_29 = arith.constant 0 : index
    %c0_30 = arith.constant 0 : index
    %46 = vector.load %arg5[%c0_29, %c0_30] : memref<1x128xf32, #tpu.memory_space<vmem>>, vector<1x128xf32>
    tpu.vector_store %arg5[%c0_29, %c0_30], %45 {strides = array<i32>} : memref<1x128xf32, #tpu.memory_space<vmem>>, vector<1x128xf32>,
    return
  }
  func.func @transform_0(%arg0: i32) -> (i32, i32) {
    %c0_i32 = arith.constant 0 : i32
    %c0_i32_0 = arith.constant 0 : i32
    return %arg0, %c0_i32 : i32, i32
  }
  func.func @transform_1(%arg0: i32) -> (i32, i32) {
    %c0_i32 = arith.constant 0 : i32
    %c0_i32_0 = arith.constant 0 : i32
    return %arg0, %c0_i32 : i32, i32
  }
  func.func @transform_2(%arg0: i32) -> (i32, i32) {
    %c0_i32 = arith.constant 0 : i32
    %c0_i32_0 = arith.constant 0 : i32
    %c0_i32_1 = arith.constant 0 : i32
    return %c0_i32, %c0_i32_0 : i32, i32
  }
  func.func @transform_3(%arg0: i32) -> (i32, i32) {
    %c0_i32 = arith.constant 0 : i32
    %c0_i32_0 = arith.constant 0 : i32
    %c0_i32_1 = arith.constant 0 : i32
    return %c0_i32, %c0_i32_0 : i32, i32
  }
  func.func @transform_4(%arg0: i32) -> (i32, i32) {
    %c0_i32 = arith.constant 0 : i32
    %c0_i32_0 = arith.constant 0 : i32
    return %c0_i32, %arg0 : i32, i32
  }
}

</mosaic_0001>

<llo_original>
// kernel: tpu_custom_call.1
$region0: #{tpu_custom_call.1}
  #allocation0 [shape = 'u32[]', space=smem, size = 0x4, offset = 0x4, fixed_abs, tag = 'smem constant byte address 0x4 - core index']
  #allocation1 [shape = 'u32[144,128]{1,0:T(1,128)}', space=vmem, size = 0x12000, scoped, tag = 'internal scratch']
  %s0 = inlined_call_operand.vmem [shape: f32[8,32], index: 0, kind: input, shape index: {}]
  %s1 = inlined_call_operand.vmem [shape: f32[8,32], index: 1, kind: input, shape index: {}]
  %s2 = inlined_call_operand.vmem [shape: bf16[144,32], index: 2, kind: input, shape index: {}]
  %s3 = inlined_call_operand.vmem [shape: f32[129,1], index: 3, kind: input, shape index: {}]
  %s4 = inlined_call_operand.hbm [shape: f32[1,128], index: 4, kind: output, shape index: {}]
  %s5 = sld [smem:[#allocation0]]
  $region26: #{tpu_custom_call.1} parent=0
    _
  %s7 = ssub.s32 1, %s5
  %s8 = scalar_select 0, %s7, %s5
  $region1: #{tpu_custom_call.1} parent=0
    #allocation2 [shape = 'u8[512]{0}', space=vmem, size = 0x400, scoped, tag = 'output window, operand 0, single buffered']
    #allocation3 [shape = 's32[1]{0}', space=sflag, size = 0x4, scoped, tag = 'scoped memory for tpu_custom_call.1']
    %9 = vsyncpa [#allocation3], 0
    // Predicated region
    $region2: #{tpu_custom_call.1} parent=1 // pred_check
      _
    $region3: #{tpu_custom_call.1} parent=1 // pred_check_branch
      %11 = sbr.rel (0) target = $region5
    $region4: #{tpu_custom_call.1} parent=1 // pred_region
      _
    $region5: #{tpu_custom_call.1} parent=1 // pred_fallthru
      _
    // Predicated region
    $region6: #{tpu_custom_call.1} parent=1 // pred_check
      _
    $region7: #{tpu_custom_call.1} parent=1 // pred_check_branch
      %13 = sbr.rel (0) target = $region9
    $region8: #{tpu_custom_call.1} parent=1 // pred_region
      _
    $region9: #{tpu_custom_call.1} parent=1 // pred_fallthru
      _
    // Predicated region
    $region10: #{tpu_custom_call.1} parent=1 // pred_check
      _
    $region11: #{tpu_custom_call.1} parent=1 // pred_check_branch
      %15 = sbr.rel (0) target = $region13
    $region12: #{tpu_custom_call.1} parent=1 // pred_region
      _
    $region13: #{tpu_custom_call.1} parent=1 // pred_fallthru
      _
    // Predicated region
    $region14: #{tpu_custom_call.1} parent=1 // pred_check
      _
    $region15: #{tpu_custom_call.1} parent=1 // pred_check_branch
      %17 = sbr.rel (0) target = $region17
    $region16: #{tpu_custom_call.1} parent=1 // pred_region
      _
    $region17: #{tpu_custom_call.1} parent=1 // pred_fallthru
      _
    %v19 = vld [vmem:[%s0] sm:$0xff]
    %v20 = vld [vmem:[%s0 + $0x8] sm:$0xff]
    %v21 = vld [vmem:[%s0 + $0x10] sm:$0xff]
    %v22 = vld [vmem:[%s0 + $0x18] sm:$0xff]
    %v23 = vld [vmem:[%s0 + $0x20] sm:$0xff]
    %v24 = vld [vmem:[%s0 + $0x28] sm:$0xff]
    %v25 = vld [vmem:[%s0 + $0x30] sm:$0xff]
    %v26 = vld [vmem:[%s0 + $0x38] sm:$0xff]
    %v27 = vld [vmem:[%s0 + $0x40] sm:$0xff]
    %v28 = vld [vmem:[%s0 + $0x48] sm:$0xff]
    %v29 = vld [vmem:[%s0 + $0x50] sm:$0xff]
    %v30 = vld [vmem:[%s0 + $0x58] sm:$0xff]
    %v31 = vld [vmem:[%s0 + $0x60] sm:$0xff]
    %v32 = vld [vmem:[%s0 + $0x68] sm:$0xff]
    %v33 = vld [vmem:[%s0 + $0x70] sm:$0xff]
    %v34 = vld [vmem:[%s0 + $0x78] sm:$0xff]
    %v35 = vpack.c.bf16 %v20, %v19
    %v36 = vpack.c.bf16 %v22, %v21
    %v37 = vpack.c.bf16 %v24, %v23
    %v38 = vpack.c.bf16 %v26, %v25
    %v39 = vpack.c.bf16 %v28, %v27
    %v40 = vpack.c.bf16 %v30, %v29
    %v41 = vpack.c.bf16 %v32, %v31
    %v42 = vpack.c.bf16 %v34, %v33
    %v43 = vld [vmem:[%s1] sm:$0xff]
    %v44 = vld [vmem:[%s1 + $0x8] sm:$0xff]
    %v45 = vld [vmem:[%s1 + $0x10] sm:$0xff]
    %v46 = vld [vmem:[%s1 + $0x18] sm:$0xff]
    %v47 = vld [vmem:[%s1 + $0x20] sm:$0xff]
    %v48 = vld [vmem:[%s1 + $0x28] sm:$0xff]
    %v49 = vld [vmem:[%s1 + $0x30] sm:$0xff]
    %v50 = vld [vmem:[%s1 + $0x38] sm:$0xff]
    %v51 = vld [vmem:[%s1 + $0x40] sm:$0xff]
    %v52 = vld [vmem:[%s1 + $0x48] sm:$0xff]
    %v53 = vld [vmem:[%s1 + $0x50] sm:$0xff]
    %v54 = vld [vmem:[%s1 + $0x58] sm:$0xff]
    %v55 = vld [vmem:[%s1 + $0x60] sm:$0xff]
    %v56 = vld [vmem:[%s1 + $0x68] sm:$0xff]
    %v57 = vld [vmem:[%s1 + $0x70] sm:$0xff]
    %v58 = vld [vmem:[%s1 + $0x78] sm:$0xff]
    %v59 = vpack.c.bf16 %v44, %v43
    %v60 = vpack.c.bf16 %v46, %v45
    %v61 = vpack.c.bf16 %v48, %v47
    %v62 = vpack.c.bf16 %v50, %v49
    %v63 = vpack.c.bf16 %v52, %v51
    %v64 = vpack.c.bf16 %v54, %v53
    %v65 = vpack.c.bf16 %v56, %v55
    %v66 = vpack.c.bf16 %v58, %v57
    %v67 = vld [vmem:[%s2] sm:$0xf]
    %v68 = vld [vmem:[%s2 + $0x4] sm:$0xf]
    %v69 = vld [vmem:[%s2 + $0x8] sm:$0xf]
    %v70 = vld [vmem:[%s2 + $0xc] sm:$0xf]
    %v71 = vld [vmem:[%s2 + $0x10] sm:$0xf]
    %v72 = vld [vmem:[%s2 + $0x14] sm:$0xf]
    %v73 = vld [vmem:[%s2 + $0x18] sm:$0xf]
    %v74 = vld [vmem:[%s2 + $0x1c] sm:$0xf]
    %v75 = vld [vmem:[%s2 + $0x20] sm:$0xf]
    %v76 = vld [vmem:[%s2 + $0x24] sm:$0xf]
    %v77 = vld [vmem:[%s2 + $0x28] sm:$0xf]
    %v78 = vld [vmem:[%s2 + $0x2c] sm:$0xf]
    %v79 = vld [vmem:[%s2 + $0x30] sm:$0xf]
    %v80 = vld [vmem:[%s2 + $0x34] sm:$0xf]
    %v81 = vld [vmem:[%s2 + $0x38] sm:$0xf]
    %v82 = vld [vmem:[%s2 + $0x3c] sm:$0xf]
    %v83 = vld [vmem:[%s2 + $0x40] sm:$0xf]
    %v84 = vld [vmem:[%s2 + $0x44] sm:$0xf]
    %v85 = vld [vmem:[%s3] sm:$0xff]
    %v86 = vld [vmem:[%s3 + $0x8] sm:$0xff]
    %v87 = vld [vmem:[%s3 + $0x10] sm:$0xff]
    %v88 = vld [vmem:[%s3 + $0x18] sm:$0xff]
    %v89 = vld [vmem:[%s3 + $0x20] sm:$0xff]
    %v90 = vld [vmem:[%s3 + $0x28] sm:$0xff]
    %v91 = vld [vmem:[%s3 + $0x30] sm:$0xff]
    %v92 = vld [vmem:[%s3 + $0x38] sm:$0xff]
    %v93 = vld [vmem:[%s3 + $0x40] sm:$0xff]
    %v94 = vld [vmem:[%s3 + $0x48] sm:$0xff]
    %v95 = vld [vmem:[%s3 + $0x50] sm:$0xff]
    %v96 = vld [vmem:[%s3 + $0x58] sm:$0xff]
    %v97 = vld [vmem:[%s3 + $0x60] sm:$0xff]
    %v98 = vld [vmem:[%s3 + $0x68] sm:$0xff]
    %v99 = vld [vmem:[%s3 + $0x70] sm:$0xff]
    %v100 = vld [vmem:[%s3 + $0x78] sm:$0xff]
    %v101 = vld [vmem:[%s3 + $0x80] sm:$0x1]
    %103 = vset.pattern.permute.xlu0 0
    %104 = vperm.xlu0 %103, %v85
    %v105 = vpop.permute.xlu0 %104
    %108 = vset.pattern.permute.xlu0 0
    %109 = vperm.xlu0 %108, %v86
    %v110 = vpop.permute.xlu0 %109
    %113 = vset.pattern.permute.xlu0 0
    %114 = vperm.xlu0 %113, %v87
    %v115 = vpop.permute.xlu0 %114
    %118 = vset.pattern.permute.xlu0 0
    %119 = vperm.xlu0 %118, %v88
    %v120 = vpop.permute.xlu0 %119
    %v126 = vunpack.c.l.b16 %v67
    %v127 = vunpack.c.l.b16 %v68
    %v128 = vunpack.c.l.b16 %v69
    %v129 = vunpack.c.l.b16 %v70
    %v130 = vpack.c.b16 %v127, %v126
    %v131 = vpack.c.b16 %v129, %v128
    %vm132 = vcmask 261120
    %v134 = vsel %vm132, %v130, 0
    %v137 = vsel %vm132, %v131, 0
    %v140 = vsel %vm132, %v35, 0
    %v143 = vsel %vm132, %v36, 0
    %v146 = vsel %vm132, %v37, 0
    %v149 = vsel %vm132, %v38, 0
    %v152 = vsel %vm132, %v39, 0
    %v155 = vsel %vm132, %v40, 0
    %v158 = vsel %vm132, %v41, 0
    %v161 = vsel %vm132, %v42, 0
    %163 = vmatprep.subr.bf16.mxu0 0
    %164 = vmatpush1.bf16.xpose.msra.mxu0 %v161
    %165 = vmatprep.subr.bf16.mxu0 0
    %166 = vmatpush1.bf16.xpose.msra.mxu0 %v158
    %167 = vmatprep.subr.bf16.mxu0 0
    %168 = vmatpush1.bf16.xpose.msra.mxu0 %v155
    %169 = vmatprep.subr.bf16.mxu0 0
    %170 = vmatpush1.bf16.xpose.msra.mxu0 %v152
    %171 = vmatprep.subr.bf16.mxu0 0
    %172 = vmatpush1.bf16.xpose.msra.mxu0 %v149
    %173 = vmatprep.subr.bf16.mxu0 0
    %174 = vmatpush1.bf16.xpose.msra.mxu0 %v146
    %175 = vmatprep.subr.bf16.mxu0 0
    %176 = vmatpush1.bf16.xpose.msra.mxu0 %v143
    %177 = vmatprep.subr.bf16.mxu0 0
    %178 = vmatpush1.bf16.xpose.msra.mxu0 %v140
    %179 = vmatprep.subr.bf16.mxu0 0
    %180 = vmatpush2.bf16.xpose.msra.mxu0 0
    %181 = vmatprep.subr.bf16.mxu0 0
    %182 = vmatpush2.bf16.xpose.msra.mxu0 0
    %183 = vmatprep.subr.bf16.mxu0 0
    %184 = vmatpush2.bf16.xpose.msra.mxu0 0
    %185 = vmatprep.subr.bf16.mxu0 0
    %186 = vmatpush2.bf16.xpose.msra.mxu0 0
    %187 = vmatprep.subr.bf16.mxu0 0
    %188 = vmatpush2.bf16.xpose.msra.mxu0 0
    %189 = vmatprep.subr.bf16.mxu0 0
    %190 = vmatpush2.bf16.xpose.msra.mxu0 0
    %191 = vmatprep.subr.bf16.mxu0 0
    %192 = vmatpush2.bf16.xpose.msra.mxu0 0
    %193 = vmatprep.subr.bf16.mxu0 0
    %194 = vmatpush2.bf16.xpose.msra.mxu0 0
    %195 = vmatprep.mubr.bf16.mxu0 0
    %196 = vmatmul.mubr.bf16.gmra.mxu0 %v134
    %v197 = vpop.f32.mrf.mxu0
    %v198 = vadd.f32 %v105, %v197
    %v199 = vpop.f32.mrf.mxu0
    %v200 = vpop.f32.mrf.mxu0
    %v201 = vadd.f32 %v110, %v200
    %v202 = vpop.f32.mrf.mxu0
    %203 = vmatprep.mubr.bf16.mxu0 0
    %204 = vmatmul.mubr.bf16.gmra.mxu0 %v137
    %v205 = vpop.f32.mrf.mxu0
    %v206 = vadd.f32 %v115, %v205
    %v207 = vpop.f32.mrf.mxu0
    %v208 = vpop.f32.mrf.mxu0
    %v209 = vadd.f32 %v120, %v208
    %v210 = vpop.f32.mrf.mxu0
    %211 = vdwg.mxu0
    %213 = vset.pattern.permute.xlu0 0
    %214 = vperm.xlu0 %213, %v89
    %v215 = vpop.permute.xlu0 %214
    %218 = vset.pattern.permute.xlu0 0
    %219 = vperm.xlu0 %218, %v90
    %v220 = vpop.permute.xlu0 %219
    %223 = vset.pattern.permute.xlu0 0
    %224 = vperm.xlu0 %223, %v91
    %v225 = vpop.permute.xlu0 %224
    %228 = vset.pattern.permute.xlu0 0
    %229 = vperm.xlu0 %228, %v92
    %v230 = vpop.permute.xlu0 %229
    %v236 = vunpack.c.l.b16 %v71
    %v237 = vunpack.c.l.b16 %v72
    %v238 = vunpack.c.l.b16 %v73
    %v239 = vunpack.c.l.b16 %v74
    %v240 = vpack.c.b16 %v237, %v236
    %v241 = vpack.c.b16 %v239, %v238
    %v243 = vsel %vm132, %v240, 0
    %v246 = vsel %vm132, %v241, 0
    %v249 = vsel %vm132, %v59, 0
    %v252 = vsel %vm132, %v60, 0
    %v255 = vsel %vm132, %v61, 0
    %v258 = vsel %vm132, %v62, 0
    %v261 = vsel %vm132, %v63, 0
    %v264 = vsel %vm132, %v64, 0
    %v267 = vsel %vm132, %v65, 0
    %v270 = vsel %vm132, %v66, 0
    %272 = vmatprep.subr.bf16.mxu0 0
    %273 = vmatpush1.bf16.xpose.msra.mxu0 %v270
    %274 = vmatprep.subr.bf16.mxu0 0
    %275 = vmatpush1.bf16.xpose.msra.mxu0 %v267
    %276 = vmatprep.subr.bf16.mxu0 0
    %277 = vmatpush1.bf16.xpose.msra.mxu0 %v264
    %278 = vmatprep.subr.bf16.mxu0 0
    %279 = vmatpush1.bf16.xpose.msra.mxu0 %v261
    %280 = vmatprep.subr.bf16.mxu0 0
    %281 = vmatpush1.bf16.xpose.msra.mxu0 %v258
    %282 = vmatprep.subr.bf16.mxu0 0
    %283 = vmatpush1.bf16.xpose.msra.mxu0 %v255
    %284 = vmatprep.subr.bf16.mxu0 0
    %285 = vmatpush1.bf16.xpose.msra.mxu0 %v252
    %286 = vmatprep.subr.bf16.mxu0 0
    %287 = vmatpush1.bf16.xpose.msra.mxu0 %v249
    %288 = vmatprep.subr.bf16.mxu0 0
    %289 = vmatpush2.bf16.xpose.msra.mxu0 0
    %290 = vmatprep.subr.bf16.mxu0 0
    %291 = vmatpush2.bf16.xpose.msra.mxu0 0
    %292 = vmatprep.subr.bf16.mxu0 0
    %293 = vmatpush2.bf16.xpose.msra.mxu0 0
    %294 = vmatprep.subr.bf16.mxu0 0
    %295 = vmatpush2.bf16.xpose.msra.mxu0 0
    %296 = vmatprep.subr.bf16.mxu0 0
    %297 = vmatpush2.bf16.xpose.msra.mxu0 0
    %298 = vmatprep.subr.bf16.mxu0 0
    %299 = vmatpush2.bf16.xpose.msra.mxu0 0
    %300 = vmatprep.subr.bf16.mxu0 0
    %301 = vmatpush2.bf16.xpose.msra.mxu0 0
    %302 = vmatprep.subr.bf16.mxu0 0
    %303 = vmatpush2.bf16.xpose.msra.mxu0 0
    %304 = vmatprep.mubr.bf16.mxu0 0
    %305 = vmatmul.mubr.bf16.gmra.mxu0 %v243
    %v306 = vpop.f32.mrf.mxu0
    %v307 = vadd.f32 %v215, %v306
    %v308 = vpop.f32.mrf.mxu0
    %v309 = vpop.f32.mrf.mxu0
    %v310 = vadd.f32 %v220, %v309
    %v311 = vpop.f32.mrf.mxu0
    %312 = vmatprep.mubr.bf16.mxu0 0
    %313 = vmatmul.mubr.bf16.gmra.mxu0 %v246
    %v314 = vpop.f32.mrf.mxu0
    %v315 = vadd.f32 %v225, %v314
    %v316 = vpop.f32.mrf.mxu0
    %v317 = vpop.f32.mrf.mxu0
    %v318 = vadd.f32 %v230, %v317
    %v319 = vpop.f32.mrf.mxu0
    %320 = vdwg.mxu0
    %v321 = vmax.f32 %v198, 0.0
    %v322 = vmax.f32 %v201, 0.0
    %v323 = vmax.f32 %v206, 0.0
    %v324 = vmax.f32 %v209, 0.0
    %v325 = vmax.f32 %v307, 0.0
    %v326 = vmax.f32 %v310, 0.0
    %v327 = vmax.f32 %v315, 0.0
    %v328 = vmax.f32 %v318, 0.0
    %v329 = vpack.c.bf16 %v322, %v321
    %v330 = vpack.c.bf16 %v324, %v323
    %v331 = vpack.c.bf16 %v326, %v325
    %v332 = vpack.c.bf16 %v328, %v327
    %v337 = vunpack.c.l.b16 %v79
    %v338 = vunpack.c.l.b16 %v80
    %v339 = vunpack.c.l.b16 %v81
    %v340 = vunpack.c.l.b16 %v82
    %v341 = vpack.c.b16 %v338, %v337
    %v342 = vpack.c.b16 %v340, %v339
    %v344 = vsel %vm132, %v341, 0
    %v347 = vsel %vm132, %v342, 0
    %349 = vmatprep.subr.bf16.mxu0 0
    %350 = vmatpush1.bf16.msra.mxu0 0
    %351 = vmatprep.subr.bf16.mxu0 0
    %352 = vmatpush1.bf16.msra.mxu0 0
    %353 = vmatprep.subr.bf16.mxu0 0
    %354 = vmatpush1.bf16.msra.mxu0 0
    %355 = vmatprep.subr.bf16.mxu0 0
    %356 = vmatpush1.bf16.msra.mxu0 0
    %357 = vmatprep.subr.bf16.mxu0 0
    %358 = vmatpush1.bf16.msra.mxu0 0
    %359 = vmatprep.subr.bf16.mxu0 0
    %360 = vmatpush1.bf16.msra.mxu0 0
    %361 = vmatprep.subr.bf16.mxu0 0
    %362 = vmatpush1.bf16.msra.mxu0 %v332
    %363 = vmatprep.subr.bf16.mxu0 0
    %364 = vmatpush1.bf16.msra.mxu0 %v331
    %365 = vmatprep.subr.bf16.mxu0 0
    %366 = vmatpush2.bf16.msra.mxu0 0
    %367 = vmatprep.subr.bf16.mxu0 0
    %368 = vmatpush2.bf16.msra.mxu0 0
    %369 = vmatprep.subr.bf16.mxu0 0
    %370 = vmatpush2.bf16.msra.mxu0 0
    %371 = vmatprep.subr.bf16.mxu0 0
    %372 = vmatpush2.bf16.msra.mxu0 0
    %373 = vmatprep.subr.bf16.mxu0 0
    %374 = vmatpush2.bf16.msra.mxu0 0
    %375 = vmatprep.subr.bf16.mxu0 0
    %376 = vmatpush2.bf16.msra.mxu0 0
    %377 = vmatprep.subr.bf16.mxu0 0
    %378 = vmatpush2.bf16.msra.mxu0 0
    %379 = vmatprep.subr.bf16.mxu0 0
    %380 = vmatpush2.bf16.msra.mxu0 0
    %381 = vmatprep.mubr.bf16.mxu0 0
    %382 = vmatmul.mubr.bf16.gmra.mxu0 %v344
    %v383 = vpop.f32.mrf.mxu0
    %v384 = vadd.f32 0.0, %v383
    %v385 = vpop.f32.mrf.mxu0
    %v386 = vpop.f32.mrf.mxu0
    %v387 = vadd.f32 0.0, %v386
    %v388 = vpop.f32.mrf.mxu0
    %389 = vmatprep.mubr.bf16.mxu0 0
    %390 = vmatmul.mubr.bf16.gmra.mxu0 %v347
    %v391 = vpop.f32.mrf.mxu0
    %v392 = vadd.f32 0.0, %v391
    %v393 = vpop.f32.mrf.mxu0
    %v394 = vpop.f32.mrf.mxu0
    %v395 = vadd.f32 0.0, %v394
    %v396 = vpop.f32.mrf.mxu0
    %397 = vdwg.mxu0
    %v402 = vunpack.c.l.b16 %v75
    %v403 = vunpack.c.l.b16 %v76
    %v404 = vunpack.c.l.b16 %v77
    %v405 = vunpack.c.l.b16 %v78
    %v406 = vpack.c.b16 %v403, %v402
    %v407 = vpack.c.b16 %v405, %v404
    %v409 = vsel %vm132, %v406, 0
    %v412 = vsel %vm132, %v407, 0
    %414 = vmatprep.subr.bf16.mxu0 0
    %415 = vmatpush1.bf16.msra.mxu0 0
    %416 = vmatprep.subr.bf16.mxu0 0
    %417 = vmatpush1.bf16.msra.mxu0 0
    %418 = vmatprep.subr.bf16.mxu0 0
    %419 = vmatpush1.bf16.msra.mxu0 0
    %420 = vmatprep.subr.bf16.mxu0 0
    %421 = vmatpush1.bf16.msra.mxu0 0
    %422 = vmatprep.subr.bf16.mxu0 0
    %423 = vmatpush1.bf16.msra.mxu0 0
    %424 = vmatprep.subr.bf16.mxu0 0
    %425 = vmatpush1.bf16.msra.mxu0 0
    %426 = vmatprep.subr.bf16.mxu0 0
    %427 = vmatpush1.bf16.msra.mxu0 %v330
    %428 = vmatprep.subr.bf16.mxu0 0
    %429 = vmatpush1.bf16.msra.mxu0 %v329
    %430 = vmatprep.subr.bf16.mxu0 0
    %431 = vmatpush2.bf16.msra.mxu0 0
    %432 = vmatprep.subr.bf16.mxu0 0
    %433 = vmatpush2.bf16.msra.mxu0 0
    %434 = vmatprep.subr.bf16.mxu0 0
    %435 = vmatpush2.bf16.msra.mxu0 0
    %436 = vmatprep.subr.bf16.mxu0 0
    %437 = vmatpush2.bf16.msra.mxu0 0
    %438 = vmatprep.subr.bf16.mxu0 0
    %439 = vmatpush2.bf16.msra.mxu0 0
    %440 = vmatprep.subr.bf16.mxu0 0
    %441 = vmatpush2.bf16.msra.mxu0 0
    %442 = vmatprep.subr.bf16.mxu0 0
    %443 = vmatpush2.bf16.msra.mxu0 0
    %444 = vmatprep.subr.bf16.mxu0 0
    %445 = vmatpush2.bf16.msra.mxu0 0
    %446 = vmatprep.mubr.bf16.mxu0 0
    %447 = vmatmul.mubr.bf16.gmra.mxu0 %v409
    %v448 = vpop.f32.mrf.mxu0
    %v449 = vadd.f32 %v384, %v448
    %v450 = vpop.f32.mrf.mxu0
    %v451 = vpop.f32.mrf.mxu0
    %v452 = vadd.f32 %v387, %v451
    %v453 = vpop.f32.mrf.mxu0
    %454 = vmatprep.mubr.bf16.mxu0 0
    %455 = vmatmul.mubr.bf16.gmra.mxu0 %v412
    %v456 = vpop.f32.mrf.mxu0
    %v457 = vadd.f32 %v392, %v456
    %v458 = vpop.f32.mrf.mxu0
    %v459 = vpop.f32.mrf.mxu0
    %v460 = vadd.f32 %v395, %v459
    %v461 = vpop.f32.mrf.mxu0
    %462 = vdwg.mxu0
    %464 = vset.pattern.permute.xlu0 0
    %465 = vperm.xlu0 %464, %v93
    %v466 = vpop.permute.xlu0 %465
    %469 = vset.pattern.permute.xlu0 0
    %470 = vperm.xlu0 %469, %v94
    %v471 = vpop.permute.xlu0 %470
    %474 = vset.pattern.permute.xlu0 0
    %475 = vperm.xlu0 %474, %v95
    %v476 = vpop.permute.xlu0 %475
    %479 = vset.pattern.permute.xlu0 0
    %480 = vperm.xlu0 %479, %v96
    %v481 = vpop.permute.xlu0 %480
    %v483 = vadd.f32 %v449, %v466
    %v484 = vadd.f32 %v452, %v471
    %v485 = vadd.f32 %v457, %v476
    %v486 = vadd.f32 %v460, %v481
    %v487 = vmax.f32 %v483, 0.0
    %v488 = vmax.f32 %v484, 0.0
    %v489 = vmax.f32 %v485, 0.0
    %v490 = vmax.f32 %v486, 0.0
    %v491 = vpack.c.bf16 %v488, %v487
    %v492 = vpack.c.bf16 %v490, %v489
    %494 = vset.pattern.permute.xlu0 0
    %495 = vperm.xlu0 %494, %v97
    %v496 = vpop.permute.xlu0 %495
    %499 = vset.pattern.permute.xlu0 0
    %500 = vperm.xlu0 %499, %v98
    %v501 = vpop.permute.xlu0 %500
    %v505 = vunpack.c.l.b16 %v83
    %v506 = vunpack.c.l.b16 %v84
    %v507 = vpack.c.b16 %v506, %v505
    %v509 = vsel %vm132, %v507, 0
    %511 = vmatprep.subr.bf16.mxu0 0
    %512 = vmatpush1.bf16.msra.mxu0 0
    %513 = vmatprep.subr.bf16.mxu0 0
    %514 = vmatpush1.bf16.msra.mxu0 0
    %515 = vmatprep.subr.bf16.mxu0 0
    %516 = vmatpush1.bf16.msra.mxu0 0
    %517 = vmatprep.subr.bf16.mxu0 0
    %518 = vmatpush1.bf16.msra.mxu0 0
    %519 = vmatprep.subr.bf16.mxu0 0
    %520 = vmatpush1.bf16.msra.mxu0 0
    %521 = vmatprep.subr.bf16.mxu0 0
    %522 = vmatpush1.bf16.msra.mxu0 0
    %523 = vmatprep.subr.bf16.mxu0 0
    %524 = vmatpush1.bf16.msra.mxu0 %v492
    %525 = vmatprep.subr.bf16.mxu0 0
    %526 = vmatpush1.bf16.msra.mxu0 %v491
    %527 = vmatprep.subr.bf16.mxu0 0
    %528 = vmatpush2.bf16.msra.mxu0 0
    %529 = vmatprep.subr.bf16.mxu0 0
    %530 = vmatpush2.bf16.msra.mxu0 0
    %531 = vmatprep.subr.bf16.mxu0 0
    %532 = vmatpush2.bf16.msra.mxu0 0
    %533 = vmatprep.subr.bf16.mxu0 0
    %534 = vmatpush2.bf16.msra.mxu0 0
    %535 = vmatprep.subr.bf16.mxu0 0
    %536 = vmatpush2.bf16.msra.mxu0 0
    %537 = vmatprep.subr.bf16.mxu0 0
    %538 = vmatpush2.bf16.msra.mxu0 0
    %539 = vmatprep.subr.bf16.mxu0 0
    %540 = vmatpush2.bf16.msra.mxu0 0
    %541 = vmatprep.subr.bf16.mxu0 0
    %542 = vmatpush2.bf16.msra.mxu0 0
    %543 = vmatprep.mubr.bf16.mxu0 0
    %544 = vmatmul.mubr.bf16.gmra.mxu0 %v509
    %v545 = vpop.f32.mrf.mxu0
    %v546 = vadd.f32 %v496, %v545
    %v547 = vpop.f32.mrf.mxu0
    %v548 = vpop.f32.mrf.mxu0
    %v549 = vadd.f32 %v501, %v548
    %v550 = vpop.f32.mrf.mxu0
    %551 = vdwg.mxu0
    %v552 = vmax.f32 %v546, 0.0
    %v553 = vmax.f32 %v549, 0.0
    %555 = vset.pattern.permute.xlu0 0
    %556 = vperm.xlu0 %555, %v99
    %v557 = vpop.permute.xlu0 %556
    %560 = vset.pattern.permute.xlu0 0
    %561 = vperm.xlu0 %560, %v100
    %v562 = vpop.permute.xlu0 %561
    %v564 = vmul.f32 %v552, %v557
    %v565 = vmul.f32 %v553, %v562
    %v566 = vadd.f32 %v564, %v565
    %v567 = vrot.slane %v566, 4
    %v568 = vadd.f32 %v566, %v567
    %v569 = vrot.slane %v568, 2
    %v570 = vadd.f32 %v568, %v569
    %v571 = vrot.slane %v570, 1
    %v572 = vadd.f32 %v570, %v571
    %574 = vset.pattern.permute.xlu0 0
    %575 = vperm.xlu0 %574, %v101
    %v576 = vpop.permute.xlu0 %575
    %v578 = vadd.f32 %v572, %v576
    %579 = vst [vmem:[#allocation2] sm:$0x1] %v578
    // Predicated region
    $region18: #{tpu_custom_call.1} parent=1 // pred_check
      _
    $region19: #{tpu_custom_call.1} parent=1 // pred_check_branch
      %581 = sbr.rel (0) target = $region21
    $region20: #{tpu_custom_call.1} parent=1 // pred_region
      %s583 = ssub.s32 16, 16
      %584 = vsyncadd [#allocation3], %s583
      %s586 = sshll.u32 [#allocation2], 4
      %s587 = int_to_ptr.vmem [resolvable:$true] %s586
      %589 = dma.vmem_to_hbm [thread:$0]  %s587, 16, %s4, [#allocation3]
    $region21: #{tpu_custom_call.1} parent=1 // pred_fallthru
      _
    // Predicated region
    $region22: #{tpu_custom_call.1} parent=1 // pred_check
      _
    $region23: #{tpu_custom_call.1} parent=1 // pred_check_branch
      %591 = sbr.rel (0) target = $region25
    $region24: #{tpu_custom_call.1} parent=1 // pred_region
      %592 = dma.done [#allocation3], 16
    $region25: #{tpu_custom_call.1} parent=1 // pred_fallthru
      _
    %593 = vsyncpa [#allocation3], 1

</llo_original>
